<compile_context>
chip_gen: v6e
topology: v6e:2x2x1
jax: 0.10.0
libtpu: 0.0.40
codegen_flags: <defaults>
</compile_context>

<pallas_src>
import jax
import jax.numpy as jnp
from jax.experimental import pallas as pl
from jax.experimental.pallas import tpu as pltpu


_VMEM_LIMIT_BYTES = 48 * 1024 * 1024     # scoped-VMEM hint (< v7x 64 MiB physical)
_VMEM_TILE_BUDGET = 24 * 1024 * 1024     # keep double-buffered tile footprint under this
_RESIDENT_W_BUDGET = 12 * 1024 * 1024    # max (2x buffered) weight bytes to stay resident


def _round_up(x, m):
    return ((x + m - 1) // m) * m


def _pick_tile(dim, max_tile, align):
    """Pick a tile size: the full dim when small, else the largest power-of-two
    multiple of `align` (<= max_tile) whose padding waste is small.
    Returns (tile, padded_dim)."""
    if dim <= align:
        return dim, dim                       # single full-dim block, no padding needed
    cands = []
    t = max_tile
    while t >= align:
        cands.append(t)
        t //= 2
    for t in cands:                           # largest first
        waste = _round_up(dim, t) - dim
        if waste <= max(dim // 8, align):     # avoid ~2x padded work for unlucky dims
            return t, _round_up(dim, t)
    return align, _round_up(dim, align)


def _sim_resident_kernel(x_ref, w_ref, b_ref, o_ref):
    # x_ref: (tm, K) f32   w_ref: (K, N) f32/bf16 (VMEM-resident)
    # b_ref: (1, N) f32    o_ref: (tm, N)
    x = x_ref[...].astype(jnp.bfloat16)          # in-kernel cast, hidden under MXU
    w = w_ref[...].astype(jnp.bfloat16)          # no-op if already bf16
    acc = jnp.dot(x, w, preferred_element_type=jnp.float32)
    o_ref[...] = jnp.tanh(acc + b_ref[...]).astype(o_ref.dtype)


def _sim_tiled_kernel(x_ref, w_ref, b_ref, o_ref, acc_ref):
    # x_ref: (tm, tk) f32   w_ref: (tk, tn) bf16   b_ref: (1, tn) f32
    # o_ref: (tm, tn)       acc_ref: (tm, tn) f32 scratch
    k = pl.program_id(2)

    # Fold bias into the accumulator init (saves a full (tm,tn) VPU pass later).
    @pl.when(k == 0)
    def _():
        acc_ref[...] = jnp.broadcast_to(b_ref[...], acc_ref.shape)

    acc_ref[...] += jnp.dot(x_ref[...].astype(jnp.bfloat16), w_ref[...],
                            preferred_element_type=jnp.float32)

    @pl.when(k == pl.num_programs(2) - 1)
    def _():
        o_ref[...] = jnp.tanh(acc_ref[...]).astype(o_ref.dtype)


def sim_forward(x, weight, bias):
    """y = tanh(x @ weight.T + bias); weight is (H_out, H_in) nn.Linear layout."""
    orig_shape = x.shape
    h_in = orig_shape[-1]
    h_out, w_h_in = weight.shape
    assert w_h_in == h_in, "weight in_features must match x last dim"
    out_dtype = x.dtype
    out_bytes = jnp.dtype(out_dtype).itemsize

    x2d = x.reshape(-1, h_in)
    m = x2d.shape[0]

    # One-time wrapper transpose: (H_out, H_in) -> (K, N), MXU-native contraction.
    w_t = weight.T
    b2d = bias.astype(jnp.float32).reshape(1, h_out)

    # ---- M tiling (sublane dim, align 8), minimizing padding waste. ----
    tm, m_pad = _pick_tile(m, 512, 8)
    # Megacore: make sure the parallel grid has >=2 blocks when feasible (v7x 2 TCs).
    if m_pad // tm < 2 and m >= 16 and tm % 16 == 0:
        tm //= 2
        m_pad = _round_up(m, tm)
    m_blocks = m_pad // tm

    # Weight re-used across >=3 M tiles -> pre-cast once to bf16 (halves weight
    # bytes in HBM/VMEM); otherwise keep f32 and cast in-kernel (no extra pass).
    precast_w = m_blocks >= 3
    w_elem_bytes = 2 if precast_w else 4
    w_vmem_bytes = h_in * h_out * w_elem_bytes

    cost = pl.CostEstimate(
        flops=2 * m * h_in * h_out,
        transcendentals=m * h_out,
        bytes_accessed=(m * h_in * 4                 # x stream (f32)
                        + h_in * h_out * w_elem_bytes
                        + h_out * 4
                        + m * h_out * out_bytes))

    if 2 * w_vmem_bytes <= _RESIDENT_W_BUDGET:
        # -------- Resident path: grid over M only; weight/bias stay in VMEM. --------
        def _footprint(t):
            return 2 * (t * h_in * 4                 # x tile (f32, double-buffered)
                        + w_vmem_bytes                # weight block
                        + h_out * 4                   # bias block
                        + t * h_out * out_bytes)      # output tile
        while tm > 8 and tm % 16 == 0 and _footprint(tm) > _VMEM_TILE_BUDGET:
            tm //= 2
        m_pad = _round_up(m, tm)
        m_blocks = m_pad // tm

        x_p = x2d if m_pad == m else jnp.pad(x2d, ((0, m_pad - m), (0, 0)))
        w_p = w_t.astype(jnp.bfloat16) if precast_w else w_t

        out = pl.pallas_call(
            _sim_resident_kernel,
            out_shape=jax.ShapeDtypeStruct((m_pad, h_out), out_dtype),
            grid_spec=pltpu.PrefetchScalarGridSpec(
                num_scalar_prefetch=0,
                grid=(m_blocks,),
                in_specs=[
                    pl.BlockSpec((tm, h_in), lambda i: (i, 0)),      # x tile
                    pl.BlockSpec((h_in, h_out), lambda i: (0, 0)),   # resident weight
                    pl.BlockSpec((1, h_out), lambda i: (0, 0)),      # resident bias
                ],
                out_specs=pl.BlockSpec((tm, h_out), lambda i: (i, 0)),
            ),
            compiler_params=pltpu.CompilerParams(
                dimension_semantics=("parallel",),
                vmem_limit_bytes=_VMEM_LIMIT_BYTES),
            cost_estimate=cost,
        )(x_p, w_p, b2d)
        if m_pad != m:
            out = out[:m]
        return out.reshape(orig_shape[:-1] + (h_out,))

    # -------- Tiled path: 3D (M, N, K) grid with f32 VMEM accumulator. --------
    tn, n_pad = _pick_tile(h_out, 1024, 128)
    tk, k_pad = _pick_tile(h_in, 1024, 128)

    x_p = x2d
    if (m_pad, k_pad) != (m, h_in):
        x_p = jnp.pad(x2d, ((0, m_pad - m), (0, k_pad - h_in)))
    # Weight is re-streamed once per M tile -> bf16 cast is worth the one pass;
    # padding (when needed) is fused into the same wrapper op.
    w_p = w_t.astype(jnp.bfloat16)
    if (k_pad, n_pad) != (h_in, h_out):
        w_p = jnp.pad(w_p, ((0, k_pad - h_in), (0, n_pad - h_out)))
    b_p = b2d if n_pad == h_out else jnp.pad(b2d, ((0, 0), (0, n_pad - h_out)))

    grid = (m_pad // tm, n_pad // tn, k_pad // tk)
    # TODO(synk): on v5e consider pipeline_mode=pl.Buffered(3) on the weight spec
    # to hide weight-stream DMA latency (lowest HBM bandwidth generation).
    out = pl.pallas_call(
        _sim_tiled_kernel,
        out_shape=jax.ShapeDtypeStruct((m_pad, n_pad), out_dtype),
        grid_spec=pltpu.PrefetchScalarGridSpec(
            num_scalar_prefetch=0,
            grid=grid,
            in_specs=[
                pl.BlockSpec((tm, tk), lambda i, j, kk: (i, kk)),   # x tile (f32)
                pl.BlockSpec((tk, tn), lambda i, j, kk: (kk, j)),   # weight tile (bf16)
                pl.BlockSpec((1, tn), lambda i, j, kk: (0, j)),     # bias tile
            ],
            out_specs=pl.BlockSpec((tm, tn), lambda i, j, kk: (i, j)),
            scratch_shapes=[pltpu.VMEM((tm, tn), jnp.float32)],
        ),
        compiler_params=pltpu.CompilerParams(
            dimension_semantics=("parallel", "parallel", "arbitrary"),
            vmem_limit_bytes=_VMEM_LIMIT_BYTES),
        cost_estimate=cost,
    )(x_p, w_p, b_p)

    if (m_pad, n_pad) != (m, h_out):
        out = out[:m, :h_out]
    return out.reshape(orig_shape[:-1] + (h_out,))


if __name__ == "__main__":
    key = jax.random.PRNGKey(0)
    batch, seq, hidden = 2, 8, 32

    kx, kw, kb = jax.random.split(key, 3)
    x = jax.random.normal(kx, (batch, seq, hidden), dtype=jnp.float32)
    # Deterministic init mimicking nn.Linear's uniform(-1/sqrt(H), 1/sqrt(H))
    bound = 1.0 / (hidden ** 0.5)
    weight = jax.random.uniform(kw, (hidden, hidden), jnp.float32, -bound, bound)
    bias = jax.random.uniform(kb, (hidden,), jnp.float32, -bound, bound)

    y = sim_forward(x, weight, bias)
    jax.block_until_ready(y)
    assert y.shape == x.shape, f"bad output shape {y.shape}"

    # Reference 1: same bf16-quantized operands, f32 math -> tight tolerance.
    xq = x.astype(jnp.bfloat16).astype(jnp.float32)
    wq = weight.astype(jnp.bfloat16).astype(jnp.float32)
    y_ref_q = jnp.tanh(xq @ wq.T + bias)
    assert jnp.allclose(y, y_ref_q, atol=1e-4, rtol=1e-4), "mismatch vs bf16-quantized ref"

    # Reference 2: full-f32 reference -> loose tolerance (bf16 matmul operands).
    y_ref = jnp.tanh(x @ weight.T + bias)
    assert jnp.allclose(y, y_ref, atol=5e-2, rtol=5e-2), "mismatch vs f32 reference"

    print("KERNEL_OK")
</pallas_src>

<mosaic_0001>
module attributes {stable_mosaic.version = 11 : i64} {
  func.func @_sim_resident_kernel(%arg0: i32, %arg1: memref<8x32xf32, #tpu.memory_space<vmem>>, %arg2: memref<32x32xf32, #tpu.memory_space<vmem>>, %arg3: memref<1x32xf32, #tpu.memory_space<vmem>>, %arg4: memref<8x32xf32, #tpu.memory_space<vmem>>) attributes {dimension_semantics = [#tpu.dimension_semantics<parallel>], iteration_bounds = array<i64: 2>, scalar_prefetch = 0 : i64, scratch_operands = 0 : i64, tpu.core_type = #tpu.core_type<tc>, window_params = [{transform_indices = @transform_0, window_bounds = array<i64: 8, 32>}, {pipeline_mode = #tpu.pipeline_mode<synchronous>, transform_indices = @transform_1, window_bounds = array<i64: 32, 32>}, {pipeline_mode = #tpu.pipeline_mode<synchronous>, transform_indices = @transform_2, window_bounds = array<i64: 1, 32>}, {transform_indices = @transform_3, window_bounds = array<i64: 8, 32>}]} {
    %c0 = arith.constant 0 : index
    %c0_0 = arith.constant 0 : index
    %0 = vector.load %arg1[%c0, %c0_0] : memref<8x32xf32, #tpu.memory_space<vmem>>, vector<8x32xf32>
    %1 = arith.truncf %0 : vector<8x32xf32> to vector<8x32xbf16>
    %c0_1 = arith.constant 0 : index
    %c0_2 = arith.constant 0 : index
    %2 = vector.load %arg2[%c0_1, %c0_2] : memref<32x32xf32, #tpu.memory_space<vmem>>, vector<32x32xf32>
    %3 = arith.truncf %2 : vector<32x32xf32> to vector<32x32xbf16>
    %cst = arith.constant dense<0.000000e+00> : vector<8x32xf32>
    %4 = tpu.matmul %1, %3, %cst {dimension_numbers = #tpu.dot_dimension_numbers<[1], [0], [0], [1], [0, 0, 1, 1], [], []>} : vector<8x32xbf16>, vector<32x32xbf16>, vector<8x32xf32> -> vector<8x32xf32>
    %c0_3 = arith.constant 0 : index
    %c0_4 = arith.constant 0 : index
    %5 = vector.load %arg3[%c0_3, %c0_4] : memref<1x32xf32, #tpu.memory_space<vmem>>, vector<1x32xf32>
    %6 = vector.broadcast %5 : vector<1x32xf32> to vector<8x32xf32>
    %7 = arith.addf %4, %6 : vector<8x32xf32>
    %8 = math.tanh %7 : vector<8x32xf32>
    %c0_5 = arith.constant 0 : index
    %c0_6 = arith.constant 0 : index
    %9 = vector.load %arg4[%c0_5, %c0_6] : memref<8x32xf32, #tpu.memory_space<vmem>>, vector<8x32xf32>
    tpu.vector_store %arg4[%c0_5, %c0_6], %8 {strides = array<i32>} : memref<8x32xf32, #tpu.memory_space<vmem>>, vector<8x32xf32>,
    return
  }
  func.func @transform_0(%arg0: i32) -> (i32, i32) {
    %c0_i32 = arith.constant 0 : i32
    %c0_i32_0 = arith.constant 0 : i32
    return %arg0, %c0_i32 : i32, i32
  }
  func.func @transform_1(%arg0: i32) -> (i32, i32) {
    %c0_i32 = arith.constant 0 : i32
    %c0_i32_0 = arith.constant 0 : i32
    %c0_i32_1 = arith.constant 0 : i32
    return %c0_i32, %c0_i32_0 : i32, i32
  }
  func.func @transform_2(%arg0: i32) -> (i32, i32) {
    %c0_i32 = arith.constant 0 : i32
    %c0_i32_0 = arith.constant 0 : i32
    %c0_i32_1 = arith.constant 0 : i32
    return %c0_i32, %c0_i32_0 : i32, i32
  }
  func.func @transform_3(%arg0: i32) -> (i32, i32) {
    %c0_i32 = arith.constant 0 : i32
    %c0_i32_0 = arith.constant 0 : i32
    return %arg0, %c0_i32 : i32, i32
  }
}

</mosaic_0001>

<llo_original>
// kernel: tpu_custom_call.1
$region0: #{tpu_custom_call.1}
  #allocation0 [shape = 'u32[]', space=smem, size = 0x4, offset = 0x4, fixed_abs, tag = 'smem constant byte address 0x4 - core index']
  #allocation1 [shape = 'u32[144,128]{1,0:T(1,128)}', space=vmem, size = 0x12000, scoped, tag = 'internal scratch']
  %s0 = inlined_call_operand.hbm [shape: f32[16,32], index: 0, kind: input, shape index: {}]
  %s1 = inlined_call_operand.hbm [shape: f32[32,32], index: 1, kind: input, shape index: {}]
  %s2 = inlined_call_operand.vmem [shape: f32[1,32], index: 2, kind: input, shape index: {}]
  %s3 = inlined_call_operand.hbm [shape: f32[16,32], index: 3, kind: output, shape index: {}]
  %s4 = sld [smem:[#allocation0]]
  $region53: #{tpu_custom_call.1} parent=0
    _
  %s6 = ssub.s32 1, %s4
  %s7 = scalar_select 0, %s6, %s4
  $region1: #{tpu_custom_call.1} parent=0
    #allocation2 [shape = 'u8[8192]{0}', space=vmem, size = 0x2000, scoped, tag = 'input window, operand 0']
    #allocation3 [shape = 's32[2]{0}', space=sflag, size = 0x8, scoped, tag = 'scoped memory for tpu_custom_call.1']
    #allocation4 [shape = 's32[2]{0}', space=sflag, size = 0x8, scoped, tag = 'scoped memory for tpu_custom_call.1']
    #allocation5 [shape = 'u8[16384]{0}', space=vmem, size = 0x4000, scoped, tag = 'input window, operand 1, single buffered']
    #allocation6 [shape = 's32[1]{0}', space=sflag, size = 0x4, scoped, tag = 'scoped memory for tpu_custom_call.1']
    #allocation7 [shape = 'u8[8192]{0}', space=vmem, size = 0x2000, scoped, tag = 'output window, operand 0']
    %8 = vsyncpa [#allocation3], 0
    %s9 = scalar_lea.sflag [#allocation3], 1
    %10 = vsyncpa %s9, 0
    %11 = vsyncpa [#allocation6], 0
    %12 = vsyncpa [#allocation4], 0
    %s13 = scalar_lea.sflag [#allocation4], 1
    %14 = vsyncpa %s13, 0
    loop: start=0, step=1, limit=4
    $region2: #{tpu_custom_call.1} parent=1 // loop_pre_header
      _
    $region3: #{tpu_custom_call.1} parent=1 // loop_header
      %s16 = sphi 0, %s20
      %p17 = scmp.ge.s32.totalorder %s16, 4
      %s26 = sphi 0, %s28
      %s29 = sphi 0, %s26
      %s30 = sphi 0, %s29
      %s46 = sphi 0, %s30
      %s50 = sphi 0, %s50
      %s52 = sphi 0, %s50
      %s53 = sphi 0, %s52
      %s67 = sphi 0, %s53
      %s71 = sphi 0, %s71
      %s73 = sphi 0, %s71
      %s74 = sphi 0, %s73
      %s88 = sphi 0, %s74
      %s94 = sphi 0, %s96
      %s97 = sphi 0, %s94
      %s98 = sphi 0, %s97
      %s114 = sphi 0, %s98
    $region4: #{tpu_custom_call.1} parent=1 // loop_header_branch
      %19 = sbr.rel (%p17) target = $region8
    $region5: #{tpu_custom_call.1} parent=1 // loop_body
      %s21 = ssub.s32 %s16, 1
      %s22 = ssub.s32 %s16, 2
      %s23 = sadd.s32 %s16, 1
      %s24 = ssub.s32 %s16, %s23
      %p25 = scmp.eq.s32.totalorder %s24, 0
      %s27 = sadd.s32 %s26, 1
      %s28 = scalar_select %p25, %s26, %s27
      %p31 = pneg %p25
      %p32 = scmp.eq.s32.totalorder %s16, 1
      %p33 = por %p31, %p32
      %p34 = scmp.ne.s32.totalorder %s26, %s29
      %p35 = scmp.eq.s32.totalorder %s16, 0
      %p36 = por %p34, %p35
      %p37 = scmp.ne.s32.totalorder %s26, %s29
      %p38 = scmp.eq.s32.totalorder %s21, 1
      %p39 = por %p37, %p38
      %p40 = scmp.ne.s32.totalorder %s29, %s30
      %p41 = scmp.eq.s32.totalorder %s21, 0
      %p42 = por %p40, %p41
      %p43 = scmp.ne.s32.totalorder %s29, %s30
      %p44 = scmp.eq.s32.totalorder %s22, 1
      %p45 = por %p43, %p44
      %p47 = scmp.ne.s32.totalorder %s30, %s46
      %p48 = scmp.eq.s32.totalorder %s22, 0
      %p49 = por %p47, %p48
      %s51 = sadd.s32 %s50, 1
      %p54 = scmp.eq.s32.totalorder %s16, 1
      %p55 = scmp.ne.s32.totalorder %s50, %s52
      %p56 = scmp.eq.s32.totalorder %s16, 0
      %p57 = por %p55, %p56
      %p58 = scmp.ne.s32.totalorder %s50, %s52
      %p59 = scmp.eq.s32.totalorder %s21, 1
      %p60 = por %p58, %p59
      %p61 = scmp.ne.s32.totalorder %s52, %s53
      %p62 = scmp.eq.s32.totalorder %s21, 0
      %p63 = por %p61, %p62
      %p64 = scmp.ne.s32.totalorder %s52, %s53
      %p65 = scmp.eq.s32.totalorder %s22, 1
      %p66 = por %p64, %p65
      %p68 = scmp.ne.s32.totalorder %s53, %s67
      %p69 = scmp.eq.s32.totalorder %s22, 0
      %p70 = por %p68, %p69
      %s72 = sadd.s32 %s71, 1
      %p75 = scmp.eq.s32.totalorder %s16, 1
      %p76 = scmp.ne.s32.totalorder %s71, %s73
      %p77 = scmp.eq.s32.totalorder %s16, 0
      %p78 = por %p76, %p77
      %p79 = scmp.ne.s32.totalorder %s71, %s73
      %p80 = scmp.eq.s32.totalorder %s21, 1
      %p81 = por %p79, %p80
      %p82 = scmp.ne.s32.totalorder %s73, %s74
      %p83 = scmp.eq.s32.totalorder %s21, 0
      %p84 = por %p82, %p83
      %p85 = scmp.ne.s32.totalorder %s73, %s74
      %p86 = scmp.eq.s32.totalorder %s22, 1
      %p87 = por %p85, %p86
      %p89 = scmp.ne.s32.totalorder %s74, %s88
      %p90 = scmp.eq.s32.totalorder %s22, 0
      %p91 = por %p89, %p90
      %s92 = ssub.s32 %s16, %s23
      %p93 = scmp.eq.s32.totalorder %s92, 0
      %s95 = sadd.s32 %s94, 1
      %s96 = scalar_select %p93, %s94, %s95
      %p99 = pneg %p93
      %p100 = scmp.eq.s32.totalorder %s16, 1
      %p101 = por %p99, %p100
      %p102 = scmp.ne.s32.totalorder %s94, %s97
      %p103 = scmp.eq.s32.totalorder %s16, 0
      %p104 = por %p102, %p103
      %p105 = scmp.ne.s32.totalorder %s94, %s97
      %p106 = scmp.eq.s32.totalorder %s21, 1
      %p107 = por %p105, %p106
      %p108 = scmp.ne.s32.totalorder %s97, %s98
      %p109 = scmp.eq.s32.totalorder %s21, 0
      %p110 = por %p108, %p109
      %p111 = scmp.ne.s32.totalorder %s97, %s98
      %p112 = scmp.eq.s32.totalorder %s22, 1
      %p113 = por %p111, %p112
      %p115 = scmp.ne.s32.totalorder %s98, %s114
      %p116 = scmp.eq.s32.totalorder %s22, 0
      %p117 = por %p115, %p116
      %p118 = scmp.le.s32.totalorder 1, %s16
      %p119 = scmp.lt.s32.totalorder %s16, 3
      %p120 = pnand %p118, %p119
      %p121 = pneg %p120
      // Predicated region
      $region9: #{tpu_custom_call.1} parent=5 // pred_check
        _
      $region10: #{tpu_custom_call.1} parent=5 // pred_check_branch
        %123 = sbr.rel (%p120) target = $region12
      $region11: #{tpu_custom_call.1} parent=5 // pred_region
        %s124 = ssub.s32 %s16, 1
        // Predicated region
        $region13: #{tpu_custom_call.1} parent=11 // pred_check
          %p125 = pneg %p63
        $region14: #{tpu_custom_call.1} parent=11 // pred_check_branch
          %127 = sbr.rel (%p125) target = $region16
        $region15: #{tpu_custom_call.1} parent=11 // pred_region
          %s129 = ssub.s32 512, 512
          %130 = vsyncadd [#allocation6], %s129
          %s131 = sshll.u32 [#allocation5], 4
          %s132 = int_to_ptr.vmem [resolvable:$true] %s131
          %137 = dma.hbm_to_vmem [thread:$0]  %s1, 512, %s132, [#allocation6], 128, 128, 8
        $region16: #{tpu_custom_call.1} parent=11 // pred_fallthru
          _
        // Predicated region
        $region17: #{tpu_custom_call.1} parent=11 // pred_check
          %p138 = pneg %p84
        $region18: #{tpu_custom_call.1} parent=11 // pred_check_branch
          %140 = sbr.rel (%p138) target = $region20
        $region19: #{tpu_custom_call.1} parent=11 // pred_region
          _
        $region20: #{tpu_custom_call.1} parent=11 // pred_fallthru
          _
      $region12: #{tpu_custom_call.1} parent=5 // pred_fallthru
        _
      %p141 = scmp.lt.s32.totalorder %s16, 2
      // Predicated region
      $region21: #{tpu_custom_call.1} parent=5 // pred_check
        %p142 = pneg %p141
      $region22: #{tpu_custom_call.1} parent=5 // pred_check_branch
        %144 = sbr.rel (%p142) target = $region24
      $region23: #{tpu_custom_call.1} parent=5 // pred_region
        // Predicated region
        $region25: #{tpu_custom_call.1} parent=23 // pred_check
          %p145 = pneg %p36
        $region26: #{tpu_custom_call.1} parent=23 // pred_check_branch
          %147 = sbr.rel (%p145) target = $region28
        $region27: #{tpu_custom_call.1} parent=23 // pred_region
          %s148 = sand.u32 %s26, 1
          %s149 = scalar_lea.sflag [#allocation3], %s148
          %s150 = sand.u32 %s26, 1
          %s151 = smul.addr %s150, 8
          %s152 = scalar_lea.vmem [#allocation2], %s151
          %s154 = ssub.s32 128, 128
          %155 = vsyncadd %s149, %s154
          %s156 = smul.addr %s16, 128
          %s157 = scalar_lea.hbm %s0, %s156
          %s159 = sshll.u32 %s152, 4
          %s160 = int_to_ptr.vmem [resolvable:$true] %s159
          %162 = dma.hbm_to_vmem [thread:$0]  %s157, 128, %s160, %s149
        $region28: #{tpu_custom_call.1} parent=23 // pred_fallthru
          _
      $region24: #{tpu_custom_call.1} parent=5 // pred_fallthru
        _
      %p163 = scmp.le.s32.totalorder 1, %s16
      %p164 = scmp.lt.s32.totalorder %s16, 3
      %p165 = pnand %p163, %p164
      %p166 = pneg %p165
      // Predicated region
      $region29: #{tpu_custom_call.1} parent=5 // pred_check
        _
      $region30: #{tpu_custom_call.1} parent=5 // pred_check_branch
        %168 = sbr.rel (%p165) target = $region32
      $region31: #{tpu_custom_call.1} parent=5 // pred_region
        %s169 = ssub.s32 %s16, 1
        %s170 = sand.u32 %s29, 1
        %s171 = scalar_lea.sflag [#allocation3], %s170
        %s172 = sand.u32 %s29, 1
        %s173 = smul.addr %s172, 8
        %s174 = scalar_lea.vmem [#allocation2], %s173
        // Predicated region
        $region33: #{tpu_custom_call.1} parent=31 // pred_check
          %p175 = pneg %p42
        $region34: #{tpu_custom_call.1} parent=31 // pred_check_branch
          %177 = sbr.rel (%p175) target = $region36
        $region35: #{tpu_custom_call.1} parent=31 // pred_region
          %178 = dma.done %s171, 128
        $region36: #{tpu_custom_call.1} parent=31 // pred_fallthru
          _
        // Predicated region
        $region37: #{tpu_custom_call.1} parent=31 // pred_check
          %p179 = pneg %p63
        $region38: #{tpu_custom_call.1} parent=31 // pred_check_branch
          %181 = sbr.rel (%p179) target = $region40
        $region39: #{tpu_custom_call.1} parent=31 // pred_region
          %182 = dma.done [#allocation6], 512
        $region40: #{tpu_custom_call.1} parent=31 // pred_fallthru
          _
        %s183 = sand.u32 %s29, 1
        %s184 = scalar_lea.sflag [#allocation3], %s183
        %s185 = sand.u32 %s29, 1
        %s186 = smul.addr %s185, 8
        %s187 = scalar_lea.vmem [#allocation2], %s186
        %p188 = pneg %p42
        %p189 = pneg %p39
        %p190 = pneg %p63
        %p191 = pneg %p60
        %p192 = pneg %p84
        %p193 = pneg %p81
        %p194 = pneg %p110
        %p195 = pneg %p107
        %s196 = sand.u32 %s97, 1
        %s197 = scalar_lea.sflag [#allocation4], %s196
        %s198 = sand.u32 %s97, 1
        %s199 = smul.addr %s198, 8
        %s200 = scalar_lea.vmem [#allocation7], %s199
        %v202 = vld [vmem:[%s174] sm:$0xff]
        %v203 = vpack.c.bf16 %v202, %v202
        %v204 = vld [vmem:[#allocation5] sm:$0xff]
        %v205 = vld [vmem:[#allocation5 + $0x8] sm:$0xff]
        %v206 = vld [vmem:[#allocation5 + $0x10] sm:$0xff]
        %v207 = vld [vmem:[#allocation5 + $0x18] sm:$0xff]
        %v208 = vpack.c.bf16 %v205, %v204
        %v209 = vpack.c.bf16 %v207, %v206
        %v210 = vld [vmem:[%s2] sm:$0x1]
        %v212 = vlaneseq
        %v213 = vshrl.u32 %v212, 7
        %v214 = vsub.s32 0, %v213
        %v215 = vrot.slane %v210, %v214
        %vm217 = vcmask 261120
        %v219 = vsel %vm217, %v203, 0
        %221 = vmatprep.subr.bf16.mxu0 0
        %222 = vmatpush1.bf16.msra.mxu0 0
        %223 = vmatprep.subr.bf16.mxu0 0
        %224 = vmatpush1.bf16.msra.mxu0 0
        %225 = vmatprep.subr.bf16.mxu0 0
        %226 = vmatpush1.bf16.msra.mxu0 0
        %227 = vmatprep.subr.bf16.mxu0 0
        %228 = vmatpush1.bf16.msra.mxu0 0
        %229 = vmatprep.subr.bf16.mxu0 0
        %230 = vmatpush1.bf16.msra.mxu0 0
        %231 = vmatprep.subr.bf16.mxu0 0
        %232 = vmatpush1.bf16.msra.mxu0 0
        %233 = vmatprep.subr.bf16.mxu0 0
        %234 = vmatpush1.bf16.msra.mxu0 %v209
        %235 = vmatprep.subr.bf16.mxu0 0
        %236 = vmatpush1.bf16.msra.mxu0 %v208
        %237 = vmatprep.subr.bf16.mxu0 0
        %238 = vmatpush2.bf16.msra.mxu0 0
        %239 = vmatprep.subr.bf16.mxu0 0
        %240 = vmatpush2.bf16.msra.mxu0 0
        %241 = vmatprep.subr.bf16.mxu0 0
        %242 = vmatpush2.bf16.msra.mxu0 0
        %243 = vmatprep.subr.bf16.mxu0 0
        %244 = vmatpush2.bf16.msra.mxu0 0
        %245 = vmatprep.subr.bf16.mxu0 0
        %246 = vmatpush2.bf16.msra.mxu0 0
        %247 = vmatprep.subr.bf16.mxu0 0
        %248 = vmatpush2.bf16.msra.mxu0 0
        %249 = vmatprep.subr.bf16.mxu0 0
        %250 = vmatpush2.bf16.msra.mxu0 0
        %251 = vmatprep.subr.bf16.mxu0 0
        %252 = vmatpush2.bf16.msra.mxu0 0
        %253 = vmatprep.mubr.bf16.mxu0 0
        %254 = vmatmul.mubr.bf16.gmra.mxu0 %v219
        %v255 = vpop.f32.mrf.mxu0
        %v256 = vadd.f32 %v215, %v255
        %v257 = vpop.f32.mrf.mxu0
        %v258 = vpop.f32.mrf.mxu0
        %v259 = vpop.f32.mrf.mxu0
        %260 = vdwg.mxu0
        %v261 = vtanh.pop %v256
        %262 = vst.msk [vmem:[%s200] sm:$0xff] %vm217, %v261
        %s263 = sand.u32 %s97, 1
        %s264 = scalar_lea.sflag [#allocation4], %s263
        %s265 = sand.u32 %s97, 1
        %s266 = smul.addr %s265, 8
        %s267 = scalar_lea.vmem [#allocation7], %s266
        // Predicated region
        $region41: #{tpu_custom_call.1} parent=31 // pred_check
          %p268 = pneg %p107
        $region42: #{tpu_custom_call.1} parent=31 // pred_check_branch
          %270 = sbr.rel (%p268) target = $region44
        $region43: #{tpu_custom_call.1} parent=31 // pred_region
          %s272 = ssub.s32 128, 128
          %273 = vsyncadd %s264, %s272
          %s274 = smul.addr %s21, 128
          %s275 = scalar_lea.hbm %s3, %s274
          %s277 = sshll.u32 %s267, 4
          %s278 = int_to_ptr.vmem [resolvable:$true] %s277
          %280 = dma.vmem_to_hbm [thread:$0]  %s278, 128, %s275, %s264
        $region44: #{tpu_custom_call.1} parent=31 // pred_fallthru
          _
      $region32: #{tpu_custom_call.1} parent=5 // pred_fallthru
        _
      %p281 = scmp.le.s32.totalorder 2, %s16
      // Predicated region
      $region45: #{tpu_custom_call.1} parent=5 // pred_check
        %p282 = pneg %p281
      $region46: #{tpu_custom_call.1} parent=5 // pred_check_branch
        %284 = sbr.rel (%p282) target = $region48
      $region47: #{tpu_custom_call.1} parent=5 // pred_region
        %s285 = ssub.s32 %s16, 2
        // Predicated region
        $region49: #{tpu_custom_call.1} parent=47 // pred_check
          %p286 = pneg %p113
        $region50: #{tpu_custom_call.1} parent=47 // pred_check_branch
          %288 = sbr.rel (%p286) target = $region52
        $region51: #{tpu_custom_call.1} parent=47 // pred_region
          %s289 = sand.u32 %s98, 1
          %s290 = scalar_lea.sflag [#allocation4], %s289
          %s291 = sand.u32 %s98, 1
          %s292 = smul.addr %s291, 8
          %s293 = scalar_lea.vmem [#allocation7], %s292
          %294 = dma.done %s290, 128
        $region52: #{tpu_custom_call.1} parent=47 // pred_fallthru
          _
      $region48: #{tpu_custom_call.1} parent=5 // pred_fallthru
        _
    $region6: #{tpu_custom_call.1} parent=1 // loop_footer
      %s20 = sadd.s32 1, %s16
    $region7: #{tpu_custom_call.1} parent=1 // loop_footer_branch
      %15 = sbr.rel target = $region3
    $region8: #{tpu_custom_call.1} parent=1 // loop_exit
      _
    %295 = vsyncpa [#allocation3], 1
    %s296 = scalar_lea.sflag [#allocation3], 1
    %297 = vsyncpa %s296, 1
    %298 = vsyncpa [#allocation6], 1
    %299 = vsyncpa [#allocation4], 1
    %s300 = scalar_lea.sflag [#allocation4], 1
    %301 = vsyncpa %s300, 1

</llo_original>
